<compile_context>
chip_gen: v5e
topology: v5e:2x2
jax: 0.10.0
libtpu: 0.0.40
codegen_flags: <defaults>
</compile_context>

<pallas_src>
import functools

import jax
import jax.numpy as jnp
from jax.experimental import pallas as pl
from jax.experimental.pallas import tpu as pltpu


def _round_up(x: int, m: int) -> int:
    return ((x + m - 1) // m) * m


# ----------------------------- Pallas kernel ------------------------------ #
def sage_kernel(a_ref, xsrc_ref, xdst_ref, invdeg_ref, w_ref, b_ref,
                o_ref, cat_ref):
    """Grid = (dst row tiles, src K tiles).  cat_ref: [TM, 2*C_in_pad] f32."""
    k = pl.program_id(1)
    half = xsrc_ref.shape[-1]          # C_in_pad (lane-aligned, multiple of 128)
    tm = cat_ref.shape[0]

    @pl.when(k == 0)
    def _init():
        # Zero the aggregation half; self features go straight into the other
        # half (no identity matmul for the root/self path).
        cat_ref[:, :half] = jnp.zeros((tm, half), jnp.float32)
        cat_ref[:, half:] = xdst_ref[...]

    # Accumulate the neighbor-count matmul (mean numerator) on the MXU.
    # A is stored bf16 (exact small integer counts) -> HBM traffic is bf16,
    # cast up in-register so the accumulation stays exact f32.
    cat_ref[:, :half] += jnp.dot(a_ref[...].astype(jnp.float32), xsrc_ref[...],
                                 preferred_element_type=jnp.float32)

    @pl.when(k == pl.num_programs(1) - 1)
    def _finalize():
        # Exact mean: per-destination-row 1/deg scale (f32), aggregated half only.
        cat_ref[:, :half] = cat_ref[:, :half] * invdeg_ref[...]
        # Single linear matmul with K = 2*C_in_pad (MXU-sized contraction),
        # bias added once, lane-dense unmasked store.
        o_ref[...] = (jnp.dot(cat_ref[...], w_ref[...],
                              preferred_element_type=jnp.float32)
                      + b_ref[...]).astype(o_ref.dtype)


# ------------------------------- JAX glue ---------------------------------- #
def build_mean_csr_dense(csr_row_ptr, csr_col_ind, num_dst, num_src):
    """Dense equivalent of the MFG mean aggregation used by agg_concat_n2n.

    Returns (counts[num_dst, num_src] as bf16, inv_deg[num_dst] as f32)."""
    row_counts = jnp.diff(csr_row_ptr)
    n_edges = int(csr_col_ind.shape[0])
    # NOTE: assumes csr_row_ptr[-1] == n_edges (true for the sampled MFG here).
    dst = jnp.repeat(jnp.arange(num_dst, dtype=jnp.int32), row_counts,
                     total_repeat_length=n_edges)
    counts = jnp.zeros((num_dst, num_src), jnp.float32)
    counts = counts.at[dst, csr_col_ind].add(1.0)
    deg = row_counts.astype(jnp.float32)
    inv_deg = jnp.where(deg > 0, 1.0 / jnp.maximum(deg, 1.0), 0.0)
    return counts.astype(jnp.bfloat16), inv_deg


@functools.partial(jax.jit, static_argnames=("tm", "tk"))
def sage_forward_pallas(x_feat, csr_row_ptr, csr_col_ind, weight, bias,
                        *, tm=128, tk=256):
    """SAGEConv forward.

    x_feat : [num_src, C_in]   (MFG source/"in" node features; dst nodes are
                                the first num_dst rows, as in create_mfg_csr)
    weight : [C_out, 2*C_in]   torch Linear layout; concat order = (agg, self)
    bias   : [C_out]           combined bias (lin.bias + module bias)
    """
    num_dst = int(csr_row_ptr.shape[0]) - 1
    num_src, c_in = x_feat.shape
    c_out = weight.shape[0]

    counts_bf16, inv_deg = build_mean_csr_dense(
        csr_row_ptr, csr_col_ind, num_dst, num_src)

    # ---- pad to TPU-friendly tile multiples (lane-dense loads & stores) ----
    c_in_p = _round_up(c_in, 128)
    c_out_p = _round_up(c_out, 128)
    n_dst_p = _round_up(num_dst, tm)
    n_src_p = _round_up(num_src, tk)

    a = jnp.pad(counts_bf16, ((0, n_dst_p - num_dst), (0, n_src_p - num_src)))
    x_src = jnp.pad(x_feat, ((0, n_src_p - num_src), (0, c_in_p - c_in)))
    x_dst = jnp.pad(x_feat[:num_dst],
                    ((0, n_dst_p - num_dst), (0, c_in_p - c_in)))
    inv_deg_p = jnp.pad(inv_deg, (0, n_dst_p - num_dst)).reshape(n_dst_p, 1)

    # torch Linear computes x_agg @ W.T; kernel wants [2*C_in_p, C_out_p]
    w_cat = weight.astype(jnp.float32).T          # [2*C_in, C_out]
    w_p = jnp.zeros((2 * c_in_p, c_out_p), jnp.float32)
    w_p = w_p.at[:c_in, :c_out].set(w_cat[:c_in])                 # aggregated half
    w_p = w_p.at[c_in_p:c_in_p + c_in, :c_out].set(w_cat[c_in:])  # self half
    b_p = jnp.pad(bias.astype(jnp.float32),
                  (0, c_out_p - c_out)).reshape(1, c_out_p)

    grid = (n_dst_p // tm, n_src_p // tk)

    cost = pl.CostEstimate(
        flops=2 * n_dst_p * n_src_p * c_in_p
              + 2 * n_dst_p * (2 * c_in_p) * c_out_p,
        transcendentals=0,
        bytes_accessed=a.size * 2 + x_src.size * 4 + x_dst.size * 4
                       + w_p.size * 4 + n_dst_p * c_out_p * 4,
    )

    y_p = pl.pallas_call(
        sage_kernel,
        out_shape=jax.ShapeDtypeStruct((n_dst_p, c_out_p), x_feat.dtype),
        grid_spec=pltpu.PrefetchScalarGridSpec(
            num_scalar_prefetch=0,
            grid=grid,
            in_specs=[
                pl.BlockSpec((tm, tk), lambda i, k: (i, k)),             # A counts (bf16)
                pl.BlockSpec((tk, c_in_p), lambda i, k: (k, 0)),         # X (source rows)
                pl.BlockSpec((tm, c_in_p), lambda i, k: (i, 0)),         # X_dst (self rows)
                pl.BlockSpec((tm, 1), lambda i, k: (i, 0)),              # 1/deg per dst row
                pl.BlockSpec((2 * c_in_p, c_out_p), lambda i, k: (0, 0)),  # W
                pl.BlockSpec((1, c_out_p), lambda i, k: (0, 0)),         # bias
            ],
            out_specs=pl.BlockSpec((tm, c_out_p), lambda i, k: (i, 0)),
            scratch_shapes=[pltpu.VMEM((tm, 2 * c_in_p), jnp.float32)],
        ),
        compiler_params=pltpu.CompilerParams(
            dimension_semantics=("parallel", "arbitrary"),
            vmem_limit_bytes=64 * 1024 * 1024,
        ),
        cost_estimate=cost,
    )(a, x_src, x_dst, inv_deg_p, w_p, b_p)

    return y_p[:num_dst, :c_out]


# --------------------------------- main ------------------------------------ #
if __name__ == "__main__":
    key = jax.random.PRNGKey(0)
    k1, k2, k3 = jax.random.split(key, 3)

    # Small synthetic MFG (same fields the torch forward consumes).
    num_dst = 80          # output nodes (len(csr_row_ptr) - 1)
    num_src = 208         # input nodes; dst nodes are the first 80 (MFG layout)
    in_channels = 24
    out_channels = 40
    fanout = 7            # sample_count

    csr_row_ptr = jnp.arange(num_dst + 1, dtype=jnp.int32) * fanout
    csr_col_ind = jax.random.randint(k1, (num_dst * fanout,), 0, num_src,
                                     dtype=jnp.int32)
    x_feat = jax.random.normal(k2, (num_src, in_channels), jnp.float32)

    # Parameters: lin = Linear(2*C_in, C_out) with xavier_uniform(gain=relu),
    # plus the module's extra bias (initialized to zeros).
    wkey, bkey = jax.random.split(k3)
    gain = 2.0 ** 0.5
    bound = gain * (6.0 / (2 * in_channels + out_channels)) ** 0.5
    lin_weight = jax.random.uniform(wkey, (out_channels, 2 * in_channels),
                                    jnp.float32, -bound, bound)
    lin_bias = jax.random.uniform(bkey, (out_channels,), jnp.float32, -0.1, 0.1)
    sage_bias = jnp.zeros((out_channels,), jnp.float32)
    bias_total = lin_bias + sage_bias   # torch forward adds both biases

    y = sage_forward_pallas(x_feat, csr_row_ptr, csr_col_ind,
                            lin_weight, bias_total)
    jax.block_until_ready(y)

    # Pure-JAX reference: x_agg = concat(mean_agg, x_dst); y = x_agg @ W.T + b
    counts, inv_deg = build_mean_csr_dense(csr_row_ptr, csr_col_ind,
                                           num_dst, num_src)
    agg = (counts.astype(jnp.float32) @ x_feat) * inv_deg[:, None]
    x_cat = jnp.concatenate([agg, x_feat[:num_dst]], axis=-1)
    y_ref = x_cat @ lin_weight.T + bias_total

    assert y.shape == (num_dst, out_channels)
    assert jnp.allclose(y, y_ref, atol=1e-4, rtol=1e-4), \
        "Pallas SAGEConv mismatch vs reference"

    print("KERNEL_OK")
</pallas_src>

<mosaic_0001>
module attributes {stable_mosaic.version = 11 : i64} {
  func.func @sage_kernel(%arg0: i32, %arg1: i32, %arg2: memref<128x256xbf16, #tpu.memory_space<vmem>>, %arg3: memref<256x128xf32, #tpu.memory_space<vmem>>, %arg4: memref<128x128xf32, #tpu.memory_space<vmem>>, %arg5: memref<128x1xf32, #tpu.memory_space<vmem>>, %arg6: memref<256x128xf32, #tpu.memory_space<vmem>>, %arg7: memref<1x128xf32, #tpu.memory_space<vmem>>, %arg8: memref<128x128xf32, #tpu.memory_space<vmem>>, %arg9: memref<128x256xf32, #tpu.memory_space<vmem>>) attributes {dimension_semantics = [#tpu.dimension_semantics<parallel>, #tpu.dimension_semantics<arbitrary>], iteration_bounds = array<i64: 1, 1>, scalar_prefetch = 0 : i64, scratch_operands = 1 : i64, tpu.core_type = #tpu.core_type<tc>, window_params = [{transform_indices = @transform_0, window_bounds = array<i64: 128, 256>}, {transform_indices = @transform_1, window_bounds = array<i64: 256, 128>}, {transform_indices = @transform_2, window_bounds = array<i64: 128, 128>}, {transform_indices = @transform_3, window_bounds = array<i64: 128, 1>}, {pipeline_mode = #tpu.pipeline_mode<synchronous>, transform_indices = @transform_4, window_bounds = array<i64: 256, 128>}, {pipeline_mode = #tpu.pipeline_mode<synchronous>, transform_indices = @transform_5, window_bounds = array<i64: 1, 128>}, {transform_indices = @transform_6, window_bounds = array<i64: 128, 128>}]} {
    %c0_i32 = arith.constant 0 : i32
    %0 = arith.cmpi eq, %arg1, %c0_i32 : i32
    %1 = arith.extui %0 : i1 to i32
    %c0_i32_0 = arith.constant 0 : i32
    %2 = arith.cmpi ne, %1, %c0_i32_0 : i32
    scf.if %2 {
      %cst_10 = arith.constant 0.000000e+00 : f32
      %13 = vector.broadcast %cst_10 : f32 to vector<128x128xf32>
      %c0_11 = arith.constant 0 : index
      %c0_12 = arith.constant 0 : index
      %14 = vector.load %arg9[%c0_11, %c0_12] : memref<128x256xf32, #tpu.memory_space<vmem>>, vector<128x128xf32>
      tpu.vector_store %arg9[%c0_11, %c0_12], %13 {strides = array<i32>} : memref<128x256xf32, #tpu.memory_space<vmem>>, vector<128x128xf32>,
      %c0_13 = arith.constant 0 : index
      %c0_14 = arith.constant 0 : index
      %15 = vector.load %arg4[%c0_13, %c0_14] : memref<128x128xf32, #tpu.memory_space<vmem>>, vector<128x128xf32>
      %c0_15 = arith.constant 0 : index
      %c128 = arith.constant 128 : index
      %16 = vector.load %arg9[%c0_15, %c128] : memref<128x256xf32, #tpu.memory_space<vmem>>, vector<128x128xf32>
      tpu.vector_store %arg9[%c0_15, %c128], %15 {strides = array<i32>} : memref<128x256xf32, #tpu.memory_space<vmem>>, vector<128x128xf32>,
    } else {
    }
    %c0 = arith.constant 0 : index
    %c0_1 = arith.constant 0 : index
    %3 = vector.load %arg9[%c0, %c0_1] : memref<128x256xf32, #tpu.memory_space<vmem>>, vector<128x128xf32>
    %c0_2 = arith.constant 0 : index
    %c0_3 = arith.constant 0 : index
    %4 = vector.load %arg2[%c0_2, %c0_3] : memref<128x256xbf16, #tpu.memory_space<vmem>>, vector<128x256xbf16>
    %5 = arith.extf %4 : vector<128x256xbf16> to vector<128x256xf32>
    %c0_4 = arith.constant 0 : index
    %c0_5 = arith.constant 0 : index
    %6 = vector.load %arg3[%c0_4, %c0_5] : memref<256x128xf32, #tpu.memory_space<vmem>>, vector<256x128xf32>
    %cst = arith.constant dense<0.000000e+00> : vector<128x128xf32>
    %7 = tpu.matmul %5, %6, %cst {dimension_numbers = #tpu.dot_dimension_numbers<[1], [0], [0], [1], [0, 0, 1, 1], [], []>} : vector<128x256xf32>, vector<256x128xf32>, vector<128x128xf32> -> vector<128x128xf32>
    %8 = arith.addf %3, %7 : vector<128x128xf32>
    %c0_6 = arith.constant 0 : index
    %c0_7 = arith.constant 0 : index
    %9 = vector.load %arg9[%c0_6, %c0_7] : memref<128x256xf32, #tpu.memory_space<vmem>>, vector<128x128xf32>
    tpu.vector_store %arg9[%c0_6, %c0_7], %8 {strides = array<i32>} : memref<128x256xf32, #tpu.memory_space<vmem>>, vector<128x128xf32>,
    %c0_i32_8 = arith.constant 0 : i32
    %10 = arith.cmpi eq, %arg1, %c0_i32_8 : i32
    %11 = arith.extui %10 : i1 to i32
    %c0_i32_9 = arith.constant 0 : i32
    %12 = arith.cmpi ne, %11, %c0_i32_9 : i32
    scf.if %12 {
      %c0_10 = arith.constant 0 : index
      %c0_11 = arith.constant 0 : index
      %13 = vector.load %arg9[%c0_10, %c0_11] : memref<128x256xf32, #tpu.memory_space<vmem>>, vector<128x128xf32>
      %c0_12 = arith.constant 0 : index
      %c0_13 = arith.constant 0 : index
      %14 = vector.load %arg5[%c0_12, %c0_13] : memref<128x1xf32, #tpu.memory_space<vmem>>, vector<128x1xf32>
      %15 = vector.broadcast %14 : vector<128x1xf32> to vector<128x128xf32>
      %16 = arith.mulf %13, %15 : vector<128x128xf32>
      %c0_14 = arith.constant 0 : index
      %c0_15 = arith.constant 0 : index
      %17 = vector.load %arg9[%c0_14, %c0_15] : memref<128x256xf32, #tpu.memory_space<vmem>>, vector<128x128xf32>
      tpu.vector_store %arg9[%c0_14, %c0_15], %16 {strides = array<i32>} : memref<128x256xf32, #tpu.memory_space<vmem>>, vector<128x128xf32>,
      %c0_16 = arith.constant 0 : index
      %c0_17 = arith.constant 0 : index
      %18 = vector.load %arg9[%c0_16, %c0_17] : memref<128x256xf32, #tpu.memory_space<vmem>>, vector<128x256xf32>
      %c0_18 = arith.constant 0 : index
      %c0_19 = arith.constant 0 : index
      %19 = vector.load %arg6[%c0_18, %c0_19] : memref<256x128xf32, #tpu.memory_space<vmem>>, vector<256x128xf32>
      %cst_20 = arith.constant dense<0.000000e+00> : vector<128x128xf32>
      %20 = tpu.matmul %18, %19, %cst_20 {dimension_numbers = #tpu.dot_dimension_numbers<[1], [0], [0], [1], [0, 0, 1, 1], [], []>} : vector<128x256xf32>, vector<256x128xf32>, vector<128x128xf32> -> vector<128x128xf32>
      %c0_21 = arith.constant 0 : index
      %c0_22 = arith.constant 0 : index
      %21 = vector.load %arg7[%c0_21, %c0_22] : memref<1x128xf32, #tpu.memory_space<vmem>>, vector<1x128xf32>
      %22 = vector.broadcast %21 : vector<1x128xf32> to vector<128x128xf32>
      %23 = arith.addf %20, %22 : vector<128x128xf32>
      %c0_23 = arith.constant 0 : index
      %c0_24 = arith.constant 0 : index
      %24 = vector.load %arg8[%c0_23, %c0_24] : memref<128x128xf32, #tpu.memory_space<vmem>>, vector<128x128xf32>
      tpu.vector_store %arg8[%c0_23, %c0_24], %23 {strides = array<i32>} : memref<128x128xf32, #tpu.memory_space<vmem>>, vector<128x128xf32>,
    } else {
    }
    return
  }
  func.func @transform_0(%arg0: i32, %arg1: i32) -> (i32, i32) {
    %c0_i32 = arith.constant 0 : i32
    return %arg0, %arg1 : i32, i32
  }
  func.func @transform_1(%arg0: i32, %arg1: i32) -> (i32, i32) {
    %c0_i32 = arith.constant 0 : i32
    %c0_i32_0 = arith.constant 0 : i32
    return %arg1, %c0_i32 : i32, i32
  }
  func.func @transform_2(%arg0: i32, %arg1: i32) -> (i32, i32) {
    %c0_i32 = arith.constant 0 : i32
    %c0_i32_0 = arith.constant 0 : i32
    return %arg0, %c0_i32 : i32, i32
  }
  func.func @transform_3(%arg0: i32, %arg1: i32) -> (i32, i32) {
    %c0_i32 = arith.constant 0 : i32
    %c0_i32_0 = arith.constant 0 : i32
    return %arg0, %c0_i32 : i32, i32
  }
  func.func @transform_4(%arg0: i32, %arg1: i32) -> (i32, i32) {
    %c0_i32 = arith.constant 0 : i32
    %c0_i32_0 = arith.constant 0 : i32
    %c0_i32_1 = arith.constant 0 : i32
    return %c0_i32, %c0_i32_0 : i32, i32
  }
  func.func @transform_5(%arg0: i32, %arg1: i32) -> (i32, i32) {
    %c0_i32 = arith.constant 0 : i32
    %c0_i32_0 = arith.constant 0 : i32
    %c0_i32_1 = arith.constant 0 : i32
    return %c0_i32, %c0_i32_0 : i32, i32
  }
  func.func @transform_6(%arg0: i32, %arg1: i32) -> (i32, i32) {
    %c0_i32 = arith.constant 0 : i32
    %c0_i32_0 = arith.constant 0 : i32
    return %arg0, %c0_i32 : i32, i32
  }
}

</mosaic_0001>

<llo_original>
// kernel: sage_forward_pallas.1
$region0: #{sage_forward_pallas.1}
  #allocation0 [shape = 'u32[]', space=smem, size = 0x4, offset = 0x4, fixed_abs, tag = 'smem constant byte address 0x4 - core index']
  #allocation1 [shape = 'u32[72,128]{1,0:T(1,128)}', space=vmem, size = 0x9000, scoped, tag = 'internal scratch']
  #allocation2 [shape = 'f32[128,256]{1,0:T(8,128)}', space=vmem, size = 0x20000, scoped, tag = 'scratch operand']
  %s0 = inlined_call_operand.vmem [shape: bf16[128,256], index: 0, kind: input, shape index: {}]
  %s1 = inlined_call_operand.vmem [shape: f32[256,128], index: 1, kind: input, shape index: {}]
  %s2 = inlined_call_operand.vmem [shape: f32[128,128], index: 2, kind: input, shape index: {}]
  %s3 = inlined_call_operand.vmem [shape: f32[128,1], index: 3, kind: input, shape index: {}]
  %s4 = inlined_call_operand.vmem [shape: f32[256,128], index: 4, kind: input, shape index: {}]
  %s5 = inlined_call_operand.vmem [shape: f32[1,128], index: 5, kind: input, shape index: {}]
  %s6 = inlined_call_operand.vmem [shape: f32[128,128], index: 6, kind: output, shape index: {}]
  %s7 = sld [smem:[#allocation0]]
  $region42: #{sage_forward_pallas.1} parent=0
    _
  %s9 = ssub.s32 1, %s7
  %s10 = scalar_select 0, %s9, %s7
  // Predicated region
  $region2: #{sage_forward_pallas.1} parent=0 // pred_check
    _
  $region3: #{sage_forward_pallas.1} parent=0 // pred_check_branch
    %12 = sbr.rel (0) target = $region5
  $region4: #{sage_forward_pallas.1} parent=0 // pred_region
    _
  $region5: #{sage_forward_pallas.1} parent=0 // pred_fallthru
    _
  // Predicated region
  $region6: #{sage_forward_pallas.1} parent=0 // pred_check
    _
  $region7: #{sage_forward_pallas.1} parent=0 // pred_check_branch
    %14 = sbr.rel (0) target = $region9
  $region8: #{sage_forward_pallas.1} parent=0 // pred_region
    _
  $region9: #{sage_forward_pallas.1} parent=0 // pred_fallthru
    _
  // Predicated region
  $region10: #{sage_forward_pallas.1} parent=0 // pred_check
    _
  $region11: #{sage_forward_pallas.1} parent=0 // pred_check_branch
    %16 = sbr.rel (0) target = $region13
  $region12: #{sage_forward_pallas.1} parent=0 // pred_region
    _
  $region13: #{sage_forward_pallas.1} parent=0 // pred_fallthru
    _
  // Predicated region
  $region14: #{sage_forward_pallas.1} parent=0 // pred_check
    _
  $region15: #{sage_forward_pallas.1} parent=0 // pred_check_branch
    %18 = sbr.rel (0) target = $region17
  $region16: #{sage_forward_pallas.1} parent=0 // pred_region
    _
  $region17: #{sage_forward_pallas.1} parent=0 // pred_fallthru
    _
  // Predicated region
  $region18: #{sage_forward_pallas.1} parent=0 // pred_check
    _
  $region19: #{sage_forward_pallas.1} parent=0 // pred_check_branch
    %20 = sbr.rel (0) target = $region21
  $region20: #{sage_forward_pallas.1} parent=0 // pred_region
    _
  $region21: #{sage_forward_pallas.1} parent=0 // pred_fallthru
    _
  // Predicated region
  $region22: #{sage_forward_pallas.1} parent=0 // pred_check
    _
  $region23: #{sage_forward_pallas.1} parent=0 // pred_check_branch
    %22 = sbr.rel (0) target = $region25
  $region24: #{sage_forward_pallas.1} parent=0 // pred_region
    _
  $region25: #{sage_forward_pallas.1} parent=0 // pred_fallthru
    _
  %p23 = scmp.eq.s32.totalorder 0, 0
  // Predicated region
  $region26: #{sage_forward_pallas.1} parent=0 // pred_check
    %p24 = pneg %p23
  $region27: #{sage_forward_pallas.1} parent=0 // pred_check_branch
    %26 = sbr.rel (%p24) target = $region29
  $region28: #{sage_forward_pallas.1} parent=0 // pred_region
    %27 = vst [vmem:[#allocation2] sm:$0xff] 0.0
    %28 = vst [vmem:[#allocation2 + $0x10] sm:$0xff] 0.0
    %29 = vst [vmem:[#allocation2 + $0x20] sm:$0xff] 0.0
    %30 = vst [vmem:[#allocation2 + $0x30] sm:$0xff] 0.0
    %31 = vst [vmem:[#allocation2 + $0x40] sm:$0xff] 0.0
    %32 = vst [vmem:[#allocation2 + $0x50] sm:$0xff] 0.0
    %33 = vst [vmem:[#allocation2 + $0x60] sm:$0xff] 0.0
    %34 = vst [vmem:[#allocation2 + $0x70] sm:$0xff] 0.0
    %35 = vst [vmem:[#allocation2 + $0x80] sm:$0xff] 0.0
    %36 = vst [vmem:[#allocation2 + $0x90] sm:$0xff] 0.0
    %37 = vst [vmem:[#allocation2 + $0xa0] sm:$0xff] 0.0
    %38 = vst [vmem:[#allocation2 + $0xb0] sm:$0xff] 0.0
    %39 = vst [vmem:[#allocation2 + $0xc0] sm:$0xff] 0.0
    %40 = vst [vmem:[#allocation2 + $0xd0] sm:$0xff] 0.0
    %41 = vst [vmem:[#allocation2 + $0xe0] sm:$0xff] 0.0
    %42 = vst [vmem:[#allocation2 + $0xf0] sm:$0xff] 0.0
    %v43 = vld [vmem:[%s2] sm:$0xff]
    %v44 = vld [vmem:[%s2 + $0x8] sm:$0xff]
    %v45 = vld [vmem:[%s2 + $0x10] sm:$0xff]
    %v46 = vld [vmem:[%s2 + $0x18] sm:$0xff]
    %v47 = vld [vmem:[%s2 + $0x20] sm:$0xff]
    %v48 = vld [vmem:[%s2 + $0x28] sm:$0xff]
    %v49 = vld [vmem:[%s2 + $0x30] sm:$0xff]
    %v50 = vld [vmem:[%s2 + $0x38] sm:$0xff]
    %v51 = vld [vmem:[%s2 + $0x40] sm:$0xff]
    %v52 = vld [vmem:[%s2 + $0x48] sm:$0xff]
    %v53 = vld [vmem:[%s2 + $0x50] sm:$0xff]
    %v54 = vld [vmem:[%s2 + $0x58] sm:$0xff]
    %v55 = vld [vmem:[%s2 + $0x60] sm:$0xff]
    %v56 = vld [vmem:[%s2 + $0x68] sm:$0xff]
    %v57 = vld [vmem:[%s2 + $0x70] sm:$0xff]
    %v58 = vld [vmem:[%s2 + $0x78] sm:$0xff]
    %59 = vst [vmem:[#allocation2 + $0x8] sm:$0xff] %v43
    %60 = vst [vmem:[#allocation2 + $0x18] sm:$0xff] %v44
    %61 = vst [vmem:[#allocation2 + $0x28] sm:$0xff] %v45
    %62 = vst [vmem:[#allocation2 + $0x38] sm:$0xff] %v46
    %63 = vst [vmem:[#allocation2 + $0x48] sm:$0xff] %v47
    %64 = vst [vmem:[#allocation2 + $0x58] sm:$0xff] %v48
    %65 = vst [vmem:[#allocation2 + $0x68] sm:$0xff] %v49
    %66 = vst [vmem:[#allocation2 + $0x78] sm:$0xff] %v50
    %67 = vst [vmem:[#allocation2 + $0x88] sm:$0xff] %v51
    %68 = vst [vmem:[#allocation2 + $0x98] sm:$0xff] %v52
    %69 = vst [vmem:[#allocation2 + $0xa8] sm:$0xff] %v53
    %70 = vst [vmem:[#allocation2 + $0xb8] sm:$0xff] %v54
    %71 = vst [vmem:[#allocation2 + $0xc8] sm:$0xff] %v55
    %72 = vst [vmem:[#allocation2 + $0xd8] sm:$0xff] %v56
    %73 = vst [vmem:[#allocation2 + $0xe8] sm:$0xff] %v57
    %74 = vst [vmem:[#allocation2 + $0xf8] sm:$0xff] %v58
  $region29: #{sage_forward_pallas.1} parent=0 // pred_fallthru
    _
  %v75 = vld [vmem:[#allocation2] sm:$0xff]
  %v76 = vld [vmem:[#allocation2 + $0x10] sm:$0xff]
  %v77 = vld [vmem:[#allocation2 + $0x20] sm:$0xff]
  %v78 = vld [vmem:[#allocation2 + $0x30] sm:$0xff]
  %v79 = vld [vmem:[#allocation2 + $0x40] sm:$0xff]
  %v80 = vld [vmem:[#allocation2 + $0x50] sm:$0xff]
  %v81 = vld [vmem:[#allocation2 + $0x60] sm:$0xff]
  %v82 = vld [vmem:[#allocation2 + $0x70] sm:$0xff]
  %v83 = vld [vmem:[#allocation2 + $0x80] sm:$0xff]
  %v84 = vld [vmem:[#allocation2 + $0x90] sm:$0xff]
  %v85 = vld [vmem:[#allocation2 + $0xa0] sm:$0xff]
  %v86 = vld [vmem:[#allocation2 + $0xb0] sm:$0xff]
  %v87 = vld [vmem:[#allocation2 + $0xc0] sm:$0xff]
  %v88 = vld [vmem:[#allocation2 + $0xd0] sm:$0xff]
  %v89 = vld [vmem:[#allocation2 + $0xe0] sm:$0xff]
  %v90 = vld [vmem:[#allocation2 + $0xf0] sm:$0xff]
  %v91 = vld [vmem:[%s0] sm:$0xff]
  %v92 = vld [vmem:[%s0 + $0x8] sm:$0xff]
  %v93 = vld [vmem:[%s0 + $0x10] sm:$0xff]
  %v94 = vld [vmem:[%s0 + $0x18] sm:$0xff]
  %v95 = vld [vmem:[%s0 + $0x20] sm:$0xff]
  %v96 = vld [vmem:[%s0 + $0x28] sm:$0xff]
  %v97 = vld [vmem:[%s0 + $0x30] sm:$0xff]
  %v98 = vld [vmem:[%s0 + $0x38] sm:$0xff]
  %v99 = vld [vmem:[%s0 + $0x40] sm:$0xff]
  %v100 = vld [vmem:[%s0 + $0x48] sm:$0xff]
  %v101 = vld [vmem:[%s0 + $0x50] sm:$0xff]
  %v102 = vld [vmem:[%s0 + $0x58] sm:$0xff]
  %v103 = vld [vmem:[%s0 + $0x60] sm:$0xff]
  %v104 = vld [vmem:[%s0 + $0x68] sm:$0xff]
  %v105 = vld [vmem:[%s0 + $0x70] sm:$0xff]
  %v106 = vld [vmem:[%s0 + $0x78] sm:$0xff]
  %v107 = vunpack.c.l.bf16 %v91
  %v108 = vunpack.c.h.bf16 %v91
  %v109 = vunpack.c.l.bf16 %v92
  %v110 = vunpack.c.h.bf16 %v92
  %v111 = vunpack.c.l.bf16 %v93
  %v112 = vunpack.c.h.bf16 %v93
  %v113 = vunpack.c.l.bf16 %v94
  %v114 = vunpack.c.h.bf16 %v94
  %v115 = vunpack.c.l.bf16 %v95
  %v116 = vunpack.c.h.bf16 %v95
  %v117 = vunpack.c.l.bf16 %v96
  %v118 = vunpack.c.h.bf16 %v96
  %v119 = vunpack.c.l.bf16 %v97
  %v120 = vunpack.c.h.bf16 %v97
  %v121 = vunpack.c.l.bf16 %v98
  %v122 = vunpack.c.h.bf16 %v98
  %v123 = vunpack.c.l.bf16 %v99
  %v124 = vunpack.c.h.bf16 %v99
  %v125 = vunpack.c.l.bf16 %v100
  %v126 = vunpack.c.h.bf16 %v100
  %v127 = vunpack.c.l.bf16 %v101
  %v128 = vunpack.c.h.bf16 %v101
  %v129 = vunpack.c.l.bf16 %v102
  %v130 = vunpack.c.h.bf16 %v102
  %v131 = vunpack.c.l.bf16 %v103
  %v132 = vunpack.c.h.bf16 %v103
  %v133 = vunpack.c.l.bf16 %v104
  %v134 = vunpack.c.h.bf16 %v104
  %v135 = vunpack.c.l.bf16 %v105
  %v136 = vunpack.c.h.bf16 %v105
  %v137 = vunpack.c.l.bf16 %v106
  %v138 = vunpack.c.h.bf16 %v106
  %v139 = vld [vmem:[%s1] sm:$0xff]
  %v140 = vld [vmem:[%s1 + $0x8] sm:$0xff]
  %v141 = vld [vmem:[%s1 + $0x10] sm:$0xff]
  %v142 = vld [vmem:[%s1 + $0x18] sm:$0xff]
  %v143 = vld [vmem:[%s1 + $0x20] sm:$0xff]
  %v144 = vld [vmem:[%s1 + $0x28] sm:$0xff]
  %v145 = vld [vmem:[%s1 + $0x30] sm:$0xff]
  %v146 = vld [vmem:[%s1 + $0x38] sm:$0xff]
  %v147 = vld [vmem:[%s1 + $0x40] sm:$0xff]
  %v148 = vld [vmem:[%s1 + $0x48] sm:$0xff]
  %v149 = vld [vmem:[%s1 + $0x50] sm:$0xff]
  %v150 = vld [vmem:[%s1 + $0x58] sm:$0xff]
  %v151 = vld [vmem:[%s1 + $0x60] sm:$0xff]
  %v152 = vld [vmem:[%s1 + $0x68] sm:$0xff]
  %v153 = vld [vmem:[%s1 + $0x70] sm:$0xff]
  %v154 = vld [vmem:[%s1 + $0x78] sm:$0xff]
  %v155 = vld [vmem:[%s1 + $0x80] sm:$0xff]
  %v156 = vld [vmem:[%s1 + $0x88] sm:$0xff]
  %v157 = vld [vmem:[%s1 + $0x90] sm:$0xff]
  %v158 = vld [vmem:[%s1 + $0x98] sm:$0xff]
  %v159 = vld [vmem:[%s1 + $0xa0] sm:$0xff]
  %v160 = vld [vmem:[%s1 + $0xa8] sm:$0xff]
  %v161 = vld [vmem:[%s1 + $0xb0] sm:$0xff]
  %v162 = vld [vmem:[%s1 + $0xb8] sm:$0xff]
  %v163 = vld [vmem:[%s1 + $0xc0] sm:$0xff]
  %v164 = vld [vmem:[%s1 + $0xc8] sm:$0xff]
  %v165 = vld [vmem:[%s1 + $0xd0] sm:$0xff]
  %v166 = vld [vmem:[%s1 + $0xd8] sm:$0xff]
  %v167 = vld [vmem:[%s1 + $0xe0] sm:$0xff]
  %v168 = vld [vmem:[%s1 + $0xe8] sm:$0xff]
  %v169 = vld [vmem:[%s1 + $0xf0] sm:$0xff]
  %v170 = vld [vmem:[%s1 + $0xf8] sm:$0xff]
  %171 = vmatpush.msra.mxu0 %v154
  %172 = vmatpush.msra.mxu0 %v153
  %173 = vmatpush.msra.mxu0 %v152
  %174 = vmatpush.msra.mxu0 %v151
  %175 = vmatpush.msra.mxu0 %v150
  %176 = vmatpush.msra.mxu0 %v149
  %177 = vmatpush.msra.mxu0 %v148
  %178 = vmatpush.msra.mxu0 %v147
  %179 = vmatpush.msra.mxu0 %v146
  %180 = vmatpush.msra.mxu0 %v145
  %181 = vmatpush.msra.mxu0 %v144
  %182 = vmatpush.msra.mxu0 %v143
  %183 = vmatpush.msra.mxu0 %v142
  %184 = vmatpush.msra.mxu0 %v141
  %185 = vmatpush.msra.mxu0 %v140
  %186 = vmatpush.msra.mxu0 %v139
  %187 = vmatmul.f32.gmra.mxu0 %v107
  %v188 = vpop.f32.mrf.mxu0
  %v189 = vadd.f32 0.0, %v188
  %190 = vmatmul.f32.gmra.mxu0 %v109
  %v191 = vpop.f32.mrf.mxu0
  %v192 = vadd.f32 0.0, %v191
  %193 = vmatmul.f32.gmra.mxu0 %v111
  %v194 = vpop.f32.mrf.mxu0
  %v195 = vadd.f32 0.0, %v194
  %196 = vmatmul.f32.gmra.mxu0 %v113
  %v197 = vpop.f32.mrf.mxu0
  %v198 = vadd.f32 0.0, %v197
  %199 = vmatmul.f32.gmra.mxu0 %v115
  %v200 = vpop.f32.mrf.mxu0
  %v201 = vadd.f32 0.0, %v200
  %202 = vmatmul.f32.gmra.mxu0 %v117
  %v203 = vpop.f32.mrf.mxu0
  %v204 = vadd.f32 0.0, %v203
  %205 = vmatmul.f32.gmra.mxu0 %v119
  %v206 = vpop.f32.mrf.mxu0
  %v207 = vadd.f32 0.0, %v206
  %208 = vmatmul.f32.gmra.mxu0 %v121
  %v209 = vpop.f32.mrf.mxu0
  %v210 = vadd.f32 0.0, %v209
  %211 = vmatmul.f32.gmra.mxu0 %v123
  %v212 = vpop.f32.mrf.mxu0
  %v213 = vadd.f32 0.0, %v212
  %214 = vmatmul.f32.gmra.mxu0 %v125
  %v215 = vpop.f32.mrf.mxu0
  %v216 = vadd.f32 0.0, %v215
  %217 = vmatmul.f32.gmra.mxu0 %v127
  %v218 = vpop.f32.mrf.mxu0
  %v219 = vadd.f32 0.0, %v218
  %220 = vmatmul.f32.gmra.mxu0 %v129
  %v221 = vpop.f32.mrf.mxu0
  %v222 = vadd.f32 0.0, %v221
  %223 = vmatmul.f32.gmra.mxu0 %v131
  %v224 = vpop.f32.mrf.mxu0
  %v225 = vadd.f32 0.0, %v224
  %226 = vmatmul.f32.gmra.mxu0 %v133
  %v227 = vpop.f32.mrf.mxu0
  %v228 = vadd.f32 0.0, %v227
  %229 = vmatmul.f32.gmra.mxu0 %v135
  %v230 = vpop.f32.mrf.mxu0
  %v231 = vadd.f32 0.0, %v230
  %232 = vmatmul.f32.gmra.mxu0 %v137
  %v233 = vpop.f32.mrf.mxu0
  %v234 = vadd.f32 0.0, %v233
  %235 = vdwg.mxu0
  %236 = vmatpush.msra.mxu0 %v170
  %237 = vmatpush.msra.mxu0 %v169
  %238 = vmatpush.msra.mxu0 %v168
  %239 = vmatpush.msra.mxu0 %v167
  %240 = vmatpush.msra.mxu0 %v166
  %241 = vmatpush.msra.mxu0 %v165
  %242 = vmatpush.msra.mxu0 %v164
  %243 = vmatpush.msra.mxu0 %v163
  %244 = vmatpush.msra.mxu0 %v162
  %245 = vmatpush.msra.mxu0 %v161
  %246 = vmatpush.msra.mxu0 %v160
  %247 = vmatpush.msra.mxu0 %v159
  %248 = vmatpush.msra.mxu0 %v158
  %249 = vmatpush.msra.mxu0 %v157
  %250 = vmatpush.msra.mxu0 %v156
  %251 = vmatpush.msra.mxu0 %v155
  %252 = vmatmul.f32.gmra.mxu0 %v108
  %v253 = vpop.f32.mrf.mxu0
  %v254 = vadd.f32 %v189, %v253
  %255 = vmatmul.f32.gmra.mxu0 %v110
  %v256 = vpop.f32.mrf.mxu0
  %v257 = vadd.f32 %v192, %v256
  %258 = vmatmul.f32.gmra.mxu0 %v112
  %v259 = vpop.f32.mrf.mxu0
  %v260 = vadd.f32 %v195, %v259
  %261 = vmatmul.f32.gmra.mxu0 %v114
  %v262 = vpop.f32.mrf.mxu0
  %v263 = vadd.f32 %v198, %v262
  %264 = vmatmul.f32.gmra.mxu0 %v116
  %v265 = vpop.f32.mrf.mxu0
  %v266 = vadd.f32 %v201, %v265
  %267 = vmatmul.f32.gmra.mxu0 %v118
  %v268 = vpop.f32.mrf.mxu0
  %v269 = vadd.f32 %v204, %v268
  %270 = vmatmul.f32.gmra.mxu0 %v120
  %v271 = vpop.f32.mrf.mxu0
  %v272 = vadd.f32 %v207, %v271
  %273 = vmatmul.f32.gmra.mxu0 %v122
  %v274 = vpop.f32.mrf.mxu0
  %v275 = vadd.f32 %v210, %v274
  %276 = vmatmul.f32.gmra.mxu0 %v124
  %v277 = vpop.f32.mrf.mxu0
  %v278 = vadd.f32 %v213, %v277
  %279 = vmatmul.f32.gmra.mxu0 %v126
  %v280 = vpop.f32.mrf.mxu0
  %v281 = vadd.f32 %v216, %v280
  %282 = vmatmul.f32.gmra.mxu0 %v128
  %v283 = vpop.f32.mrf.mxu0
  %v284 = vadd.f32 %v219, %v283
  %285 = vmatmul.f32.gmra.mxu0 %v130
  %v286 = vpop.f32.mrf.mxu0
  %v287 = vadd.f32 %v222, %v286
  %288 = vmatmul.f32.gmra.mxu0 %v132
  %v289 = vpop.f32.mrf.mxu0
  %v290 = vadd.f32 %v225, %v289
  %291 = vmatmul.f32.gmra.mxu0 %v134
  %v292 = vpop.f32.mrf.mxu0
  %v293 = vadd.f32 %v228, %v292
  %294 = vmatmul.f32.gmra.mxu0 %v136
  %v295 = vpop.f32.mrf.mxu0
  %v296 = vadd.f32 %v231, %v295
  %297 = vmatmul.f32.gmra.mxu0 %v138
  %v298 = vpop.f32.mrf.mxu0
  %v299 = vadd.f32 %v234, %v298
  %300 = vdwg.mxu0
  %v301 = vadd.f32 %v75, %v254
  %v302 = vadd.f32 %v76, %v257
  %v303 = vadd.f32 %v77, %v260
  %v304 = vadd.f32 %v78, %v263
  %v305 = vadd.f32 %v79, %v266
  %v306 = vadd.f32 %v80, %v269
  %v307 = vadd.f32 %v81, %v272
  %v308 = vadd.f32 %v82, %v275
  %v309 = vadd.f32 %v83, %v278
  %v310 = vadd.f32 %v84, %v281
  %v311 = vadd.f32 %v85, %v284
  %v312 = vadd.f32 %v86, %v287
  %v313 = vadd.f32 %v87, %v290
  %v314 = vadd.f32 %v88, %v293
  %v315 = vadd.f32 %v89, %v296
  %v316 = vadd.f32 %v90, %v299
  %317 = vst [vmem:[#allocation2] sm:$0xff] %v301
  %318 = vst [vmem:[#allocation2 + $0x10] sm:$0xff] %v302
  %319 = vst [vmem:[#allocation2 + $0x20] sm:$0xff] %v303
  %320 = vst [vmem:[#allocation2 + $0x30] sm:$0xff] %v304
  %321 = vst [vmem:[#allocation2 + $0x40] sm:$0xff] %v305
  %322 = vst [vmem:[#allocation2 + $0x50] sm:$0xff] %v306
  %323 = vst [vmem:[#allocation2 + $0x60] sm:$0xff] %v307
  %324 = vst [vmem:[#allocation2 + $0x70] sm:$0xff] %v308
  %325 = vst [vmem:[#allocation2 + $0x80] sm:$0xff] %v309
  %326 = vst [vmem:[#allocation2 + $0x90] sm:$0xff] %v310
  %327 = vst [vmem:[#allocation2 + $0xa0] sm:$0xff] %v311
  %328 = vst [vmem:[#allocation2 + $0xb0] sm:$0xff] %v312
  %329 = vst [vmem:[#allocation2 + $0xc0] sm:$0xff] %v313
  %330 = vst [vmem:[#allocation2 + $0xd0] sm:$0xff] %v314
  %331 = vst [vmem:[#allocation2 + $0xe0] sm:$0xff] %v315
  %332 = vst [vmem:[#allocation2 + $0xf0] sm:$0xff] %v316
  // Predicated region
  $region30: #{sage_forward_pallas.1} parent=0 // pred_check
    %p333 = pneg %p23
  $region31: #{sage_forward_pallas.1} parent=0 // pred_check_branch
    %335 = sbr.rel (%p333) target = $region33
  $region32: #{sage_forward_pallas.1} parent=0 // pred_region
    %v336 = vld [vmem:[#allocation2] sm:$0xff]
    %v337 = vld [vmem:[#allocation2 + $0x10] sm:$0xff]
    %v338 = vld [vmem:[#allocation2 + $0x20] sm:$0xff]
    %v339 = vld [vmem:[#allocation2 + $0x30] sm:$0xff]
    %v340 = vld [vmem:[#allocation2 + $0x40] sm:$0xff]
    %v341 = vld [vmem:[#allocation2 + $0x50] sm:$0xff]
    %v342 = vld [vmem:[#allocation2 + $0x60] sm:$0xff]
    %v343 = vld [vmem:[#allocation2 + $0x70] sm:$0xff]
    %v344 = vld [vmem:[#allocation2 + $0x80] sm:$0xff]
    %v345 = vld [vmem:[#allocation2 + $0x90] sm:$0xff]
    %v346 = vld [vmem:[#allocation2 + $0xa0] sm:$0xff]
    %v347 = vld [vmem:[#allocation2 + $0xb0] sm:$0xff]
    %v348 = vld [vmem:[#allocation2 + $0xc0] sm:$0xff]
    %v349 = vld [vmem:[#allocation2 + $0xd0] sm:$0xff]
    %v350 = vld [vmem:[#allocation2 + $0xe0] sm:$0xff]
    %v351 = vld [vmem:[#allocation2 + $0xf0] sm:$0xff]
    %v352 = vld [vmem:[%s3] sm:$0xff]
    %v353 = vld [vmem:[%s3 + $0x8] sm:$0xff]
    %v354 = vld [vmem:[%s3 + $0x10] sm:$0xff]
    %v355 = vld [vmem:[%s3 + $0x18] sm:$0xff]
    %v356 = vld [vmem:[%s3 + $0x20] sm:$0xff]
    %v357 = vld [vmem:[%s3 + $0x28] sm:$0xff]
    %v358 = vld [vmem:[%s3 + $0x30] sm:$0xff]
    %v359 = vld [vmem:[%s3 + $0x38] sm:$0xff]
    %v360 = vld [vmem:[%s3 + $0x40] sm:$0xff]
    %v361 = vld [vmem:[%s3 + $0x48] sm:$0xff]
    %v362 = vld [vmem:[%s3 + $0x50] sm:$0xff]
    %v363 = vld [vmem:[%s3 + $0x58] sm:$0xff]
    %v364 = vld [vmem:[%s3 + $0x60] sm:$0xff]
    %v365 = vld [vmem:[%s3 + $0x68] sm:$0xff]
    %v366 = vld [vmem:[%s3 + $0x70] sm:$0xff]
    %v367 = vld [vmem:[%s3 + $0x78] sm:$0xff]
    %369 = vset.pattern.permute.xlu0 0
    %370 = vperm.xlu0 %369, %v352
    %v371 = vpop.permute.xlu0 %370
    %374 = vset.pattern.permute.xlu0 0
    %375 = vperm.xlu0 %374, %v353
    %v376 = vpop.permute.xlu0 %375
    %379 = vset.pattern.permute.xlu0 0
    %380 = vperm.xlu0 %379, %v354
    %v381 = vpop.permute.xlu0 %380
    %384 = vset.pattern.permute.xlu0 0
    %385 = vperm.xlu0 %384, %v355
    %v386 = vpop.permute.xlu0 %385
    %389 = vset.pattern.permute.xlu0 0
    %390 = vperm.xlu0 %389, %v356
    %v391 = vpop.permute.xlu0 %390
    %394 = vset.pattern.permute.xlu0 0
    %395 = vperm.xlu0 %394, %v357
    %v396 = vpop.permute.xlu0 %395
    %399 = vset.pattern.permute.xlu0 0
    %400 = vperm.xlu0 %399, %v358
    %v401 = vpop.permute.xlu0 %400
    %404 = vset.pattern.permute.xlu0 0
    %405 = vperm.xlu0 %404, %v359
    %v406 = vpop.permute.xlu0 %405
    %409 = vset.pattern.permute.xlu0 0
    %410 = vperm.xlu0 %409, %v360
    %v411 = vpop.permute.xlu0 %410
    %414 = vset.pattern.permute.xlu0 0
    %415 = vperm.xlu0 %414, %v361
    %v416 = vpop.permute.xlu0 %415
    %419 = vset.pattern.permute.xlu0 0
    %420 = vperm.xlu0 %419, %v362
    %v421 = vpop.permute.xlu0 %420
    %424 = vset.pattern.permute.xlu0 0
    %425 = vperm.xlu0 %424, %v363
    %v426 = vpop.permute.xlu0 %425
    %429 = vset.pattern.permute.xlu0 0
    %430 = vperm.xlu0 %429, %v364
    %v431 = vpop.permute.xlu0 %430
    %434 = vset.pattern.permute.xlu0 0
    %435 = vperm.xlu0 %434, %v365
    %v436 = vpop.permute.xlu0 %435
    %439 = vset.pattern.permute.xlu0 0
    %440 = vperm.xlu0 %439, %v366
    %v441 = vpop.permute.xlu0 %440
    %444 = vset.pattern.permute.xlu0 0
    %445 = vperm.xlu0 %444, %v367
    %v446 = vpop.permute.xlu0 %445
    %v448 = vmul.f32 %v336, %v371
    %v449 = vmul.f32 %v337, %v376
    %v450 = vmul.f32 %v338, %v381
    %v451 = vmul.f32 %v339, %v386
    %v452 = vmul.f32 %v340, %v391
    %v453 = vmul.f32 %v341, %v396
    %v454 = vmul.f32 %v342, %v401
    %v455 = vmul.f32 %v343, %v406
    %v456 = vmul.f32 %v344, %v411
    %v457 = vmul.f32 %v345, %v416
    %v458 = vmul.f32 %v346, %v421
    %v459 = vmul.f32 %v347, %v426
    %v460 = vmul.f32 %v348, %v431
    %v461 = vmul.f32 %v349, %v436
    %v462 = vmul.f32 %v350, %v441
    %v463 = vmul.f32 %v351, %v446
    %464 = vst [vmem:[#allocation2] sm:$0xff] %v448
    %465 = vst [vmem:[#allocation2 + $0x10] sm:$0xff] %v449
    %466 = vst [vmem:[#allocation2 + $0x20] sm:$0xff] %v450
    %467 = vst [vmem:[#allocation2 + $0x30] sm:$0xff] %v451
    %468 = vst [vmem:[#allocation2 + $0x40] sm:$0xff] %v452
    %469 = vst [vmem:[#allocation2 + $0x50] sm:$0xff] %v453
    %470 = vst [vmem:[#allocation2 + $0x60] sm:$0xff] %v454
    %471 = vst [vmem:[#allocation2 + $0x70] sm:$0xff] %v455
    %472 = vst [vmem:[#allocation2 + $0x80] sm:$0xff] %v456
    %473 = vst [vmem:[#allocation2 + $0x90] sm:$0xff] %v457
    %474 = vst [vmem:[#allocation2 + $0xa0] sm:$0xff] %v458
    %475 = vst [vmem:[#allocation2 + $0xb0] sm:$0xff] %v459
    %476 = vst [vmem:[#allocation2 + $0xc0] sm:$0xff] %v460
    %477 = vst [vmem:[#allocation2 + $0xd0] sm:$0xff] %v461
    %478 = vst [vmem:[#allocation2 + $0xe0] sm:$0xff] %v462
    %479 = vst [vmem:[#allocation2 + $0xf0] sm:$0xff] %v463
    %v480 = vld [vmem:[#allocation2] sm:$0xff]
    %v481 = vld [vmem:[#allocation2 + $0x8] sm:$0xff]
    %v482 = vld [vmem:[#allocation2 + $0x10] sm:$0xff]
    %v483 = vld [vmem:[#allocation2 + $0x18] sm:$0xff]
    %v484 = vld [vmem:[#allocation2 + $0x20] sm:$0xff]
    %v485 = vld [vmem:[#allocation2 + $0x28] sm:$0xff]
    %v486 = vld [vmem:[#allocation2 + $0x30] sm:$0xff]
    %v487 = vld [vmem:[#allocation2 + $0x38] sm:$0xff]
    %v488 = vld [vmem:[#allocation2 + $0x40] sm:$0xff]
    %v489 = vld [vmem:[#allocation2 + $0x48] sm:$0xff]
    %v490 = vld [vmem:[#allocation2 + $0x50] sm:$0xff]
    %v491 = vld [vmem:[#allocation2 + $0x58] sm:$0xff]
    %v492 = vld [vmem:[#allocation2 + $0x60] sm:$0xff]
    %v493 = vld [vmem:[#allocation2 + $0x68] sm:$0xff]
    %v494 = vld [vmem:[#allocation2 + $0x70] sm:$0xff]
    %v495 = vld [vmem:[#allocation2 + $0x78] sm:$0xff]
    %v496 = vld [vmem:[#allocation2 + $0x80] sm:$0xff]
    %v497 = vld [vmem:[#allocation2 + $0x88] sm:$0xff]
    %v498 = vld [vmem:[#allocation2 + $0x90] sm:$0xff]
    %v499 = vld [vmem:[#allocation2 + $0x98] sm:$0xff]
    %v500 = vld [vmem:[#allocation2 + $0xa0] sm:$0xff]
    %v501 = vld [vmem:[#allocation2 + $0xa8] sm:$0xff]
    %v502 = vld [vmem:[#allocation2 + $0xb0] sm:$0xff]
    %v503 = vld [vmem:[#allocation2 + $0xb8] sm:$0xff]
    %v504 = vld [vmem:[#allocation2 + $0xc0] sm:$0xff]
    %v505 = vld [vmem:[#allocation2 + $0xc8] sm:$0xff]
    %v506 = vld [vmem:[#allocation2 + $0xd0] sm:$0xff]
    %v507 = vld [vmem:[#allocation2 + $0xd8] sm:$0xff]
    %v508 = vld [vmem:[#allocation2 + $0xe0] sm:$0xff]
    %v509 = vld [vmem:[#allocation2 + $0xe8] sm:$0xff]
    %v510 = vld [vmem:[#allocation2 + $0xf0] sm:$0xff]
    %v511 = vld [vmem:[#allocation2 + $0xf8] sm:$0xff]
    %v512 = vld [vmem:[%s4] sm:$0xff]
    %v513 = vld [vmem:[%s4 + $0x8] sm:$0xff]
    %v514 = vld [vmem:[%s4 + $0x10] sm:$0xff]
    %v515 = vld [vmem:[%s4 + $0x18] sm:$0xff]
    %v516 = vld [vmem:[%s4 + $0x20] sm:$0xff]
    %v517 = vld [vmem:[%s4 + $0x28] sm:$0xff]
    %v518 = vld [vmem:[%s4 + $0x30] sm:$0xff]
    %v519 = vld [vmem:[%s4 + $0x38] sm:$0xff]
    %v520 = vld [vmem:[%s4 + $0x40] sm:$0xff]
    %v521 = vld [vmem:[%s4 + $0x48] sm:$0xff]
    %v522 = vld [vmem:[%s4 + $0x50] sm:$0xff]
    %v523 = vld [vmem:[%s4 + $0x58] sm:$0xff]
    %v524 = vld [vmem:[%s4 + $0x60] sm:$0xff]
    %v525 = vld [vmem:[%s4 + $0x68] sm:$0xff]
    %v526 = vld [vmem:[%s4 + $0x70] sm:$0xff]
    %v527 = vld [vmem:[%s4 + $0x78] sm:$0xff]
    %v528 = vld [vmem:[%s4 + $0x80] sm:$0xff]
    %v529 = vld [vmem:[%s4 + $0x88] sm:$0xff]
    %v530 = vld [vmem:[%s4 + $0x90] sm:$0xff]
    %v531 = vld [vmem:[%s4 + $0x98] sm:$0xff]
    %v532 = vld [vmem:[%s4 + $0xa0] sm:$0xff]
    %v533 = vld [vmem:[%s4 + $0xa8] sm:$0xff]
    %v534 = vld [vmem:[%s4 + $0xb0] sm:$0xff]
    %v535 = vld [vmem:[%s4 + $0xb8] sm:$0xff]
    %v536 = vld [vmem:[%s4 + $0xc0] sm:$0xff]
    %v537 = vld [vmem:[%s4 + $0xc8] sm:$0xff]
    %v538 = vld [vmem:[%s4 + $0xd0] sm:$0xff]
    %v539 = vld [vmem:[%s4 + $0xd8] sm:$0xff]
    %v540 = vld [vmem:[%s4 + $0xe0] sm:$0xff]
    %v541 = vld [vmem:[%s4 + $0xe8] sm:$0xff]
    %v542 = vld [vmem:[%s4 + $0xf0] sm:$0xff]
    %v543 = vld [vmem:[%s4 + $0xf8] sm:$0xff]
    %v544 = vld [vmem:[%s5] sm:$0x1]
    %v546 = vperm.slane %v544, 0
    %548 = vmatpush.msra.mxu0 %v527
    %549 = vmatpush.msra.mxu0 %v526
    %550 = vmatpush.msra.mxu0 %v525
    %551 = vmatpush.msra.mxu0 %v524
    %552 = vmatpush.msra.mxu0 %v523
    %553 = vmatpush.msra.mxu0 %v522
    %554 = vmatpush.msra.mxu0 %v521
    %555 = vmatpush.msra.mxu0 %v520
    %556 = vmatpush.msra.mxu0 %v519
    %557 = vmatpush.msra.mxu0 %v518
    %558 = vmatpush.msra.mxu0 %v517
    %559 = vmatpush.msra.mxu0 %v516
    %560 = vmatpush.msra.mxu0 %v515
    %561 = vmatpush.msra.mxu0 %v514
    %562 = vmatpush.msra.mxu0 %v513
    %563 = vmatpush.msra.mxu0 %v512
    %564 = vmatmul.f32.gmra.mxu0 %v480
    %v565 = vpop.f32.mrf.mxu0
    %v566 = vadd.f32 %v546, %v565
    %567 = vmatmul.f32.gmra.mxu0 %v482
    %v568 = vpop.f32.mrf.mxu0
    %v569 = vadd.f32 %v546, %v568
    %570 = vmatmul.f32.gmra.mxu0 %v484
    %v571 = vpop.f32.mrf.mxu0
    %v572 = vadd.f32 %v546, %v571
    %573 = vmatmul.f32.gmra.mxu0 %v486
    %v574 = vpop.f32.mrf.mxu0
    %v575 = vadd.f32 %v546, %v574
    %576 = vmatmul.f32.gmra.mxu0 %v488
    %v577 = vpop.f32.mrf.mxu0
    %v578 = vadd.f32 %v546, %v577
    %579 = vmatmul.f32.gmra.mxu0 %v490
    %v580 = vpop.f32.mrf.mxu0
    %v581 = vadd.f32 %v546, %v580
    %582 = vmatmul.f32.gmra.mxu0 %v492
    %v583 = vpop.f32.mrf.mxu0
    %v584 = vadd.f32 %v546, %v583
    %585 = vmatmul.f32.gmra.mxu0 %v494
    %v586 = vpop.f32.mrf.mxu0
    %v587 = vadd.f32 %v546, %v586
    %588 = vmatmul.f32.gmra.mxu0 %v496
    %v589 = vpop.f32.mrf.mxu0
    %v590 = vadd.f32 %v546, %v589
    %591 = vmatmul.f32.gmra.mxu0 %v498
    %v592 = vpop.f32.mrf.mxu0
    %v593 = vadd.f32 %v546, %v592
    %594 = vmatmul.f32.gmra.mxu0 %v500
    %v595 = vpop.f32.mrf.mxu0
    %v596 = vadd.f32 %v546, %v595
    %597 = vmatmul.f32.gmra.mxu0 %v502
    %v598 = vpop.f32.mrf.mxu0
    %v599 = vadd.f32 %v546, %v598
    %600 = vmatmul.f32.gmra.mxu0 %v504
    %v601 = vpop.f32.mrf.mxu0
    %v602 = vadd.f32 %v546, %v601
    %603 = vmatmul.f32.gmra.mxu0 %v506
    %v604 = vpop.f32.mrf.mxu0
    %v605 = vadd.f32 %v546, %v604
    %606 = vmatmul.f32.gmra.mxu0 %v508
    %v607 = vpop.f32.mrf.mxu0
    %v608 = vadd.f32 %v546, %v607
    %609 = vmatmul.f32.gmra.mxu0 %v510
    %v610 = vpop.f32.mrf.mxu0
    %v611 = vadd.f32 %v546, %v610
    %612 = vdwg.mxu0
    %613 = vmatpush.msra.mxu0 %v543
    %614 = vmatpush.msra.mxu0 %v542
    %615 = vmatpush.msra.mxu0 %v541
    %616 = vmatpush.msra.mxu0 %v540
    %617 = vmatpush.msra.mxu0 %v539
    %618 = vmatpush.msra.mxu0 %v538
    %619 = vmatpush.msra.mxu0 %v537
    %620 = vmatpush.msra.mxu0 %v536
    %621 = vmatpush.msra.mxu0 %v535
    %622 = vmatpush.msra.mxu0 %v534
    %623 = vmatpush.msra.mxu0 %v533
    %624 = vmatpush.msra.mxu0 %v532
    %625 = vmatpush.msra.mxu0 %v531
    %626 = vmatpush.msra.mxu0 %v530
    %627 = vmatpush.msra.mxu0 %v529
    %628 = vmatpush.msra.mxu0 %v528
    %629 = vmatmul.f32.gmra.mxu0 %v481
    %v630 = vpop.f32.mrf.mxu0
    %v631 = vadd.f32 %v566, %v630
    %632 = vmatmul.f32.gmra.mxu0 %v483
    %v633 = vpop.f32.mrf.mxu0
    %v634 = vadd.f32 %v569, %v633
    %635 = vmatmul.f32.gmra.mxu0 %v485
    %v636 = vpop.f32.mrf.mxu0
    %v637 = vadd.f32 %v572, %v636
    %638 = vmatmul.f32.gmra.mxu0 %v487
    %v639 = vpop.f32.mrf.mxu0
    %v640 = vadd.f32 %v575, %v639
    %641 = vmatmul.f32.gmra.mxu0 %v489
    %v642 = vpop.f32.mrf.mxu0
    %v643 = vadd.f32 %v578, %v642
    %644 = vmatmul.f32.gmra.mxu0 %v491
    %v645 = vpop.f32.mrf.mxu0
    %v646 = vadd.f32 %v581, %v645
    %647 = vmatmul.f32.gmra.mxu0 %v493
    %v648 = vpop.f32.mrf.mxu0
    %v649 = vadd.f32 %v584, %v648
    %650 = vmatmul.f32.gmra.mxu0 %v495
    %v651 = vpop.f32.mrf.mxu0
    %v652 = vadd.f32 %v587, %v651
    %653 = vmatmul.f32.gmra.mxu0 %v497
    %v654 = vpop.f32.mrf.mxu0
    %v655 = vadd.f32 %v590, %v654
    %656 = vmatmul.f32.gmra.mxu0 %v499
    %v657 = vpop.f32.mrf.mxu0
    %v658 = vadd.f32 %v593, %v657
    %659 = vmatmul.f32.gmra.mxu0 %v501
    %v660 = vpop.f32.mrf.mxu0
    %v661 = vadd.f32 %v596, %v660
    %662 = vmatmul.f32.gmra.mxu0 %v503
    %v663 = vpop.f32.mrf.mxu0
    %v664 = vadd.f32 %v599, %v663
    %665 = vmatmul.f32.gmra.mxu0 %v505
    %v666 = vpop.f32.mrf.mxu0
    %v667 = vadd.f32 %v602, %v666
    %668 = vmatmul.f32.gmra.mxu0 %v507
    %v669 = vpop.f32.mrf.mxu0
    %v670 = vadd.f32 %v605, %v669
    %671 = vmatmul.f32.gmra.mxu0 %v509
    %v672 = vpop.f32.mrf.mxu0
    %v673 = vadd.f32 %v608, %v672
    %674 = vmatmul.f32.gmra.mxu0 %v511
    %v675 = vpop.f32.mrf.mxu0
    %v676 = vadd.f32 %v611, %v675
    %677 = vdwg.mxu0
    %678 = vst [vmem:[%s6] sm:$0xff] %v631
    %679 = vst [vmem:[%s6 + $0x8] sm:$0xff] %v634
    %680 = vst [vmem:[%s6 + $0x10] sm:$0xff] %v637
    %681 = vst [vmem:[%s6 + $0x18] sm:$0xff] %v640
    %682 = vst [vmem:[%s6 + $0x20] sm:$0xff] %v643
    %683 = vst [vmem:[%s6 + $0x28] sm:$0xff] %v646
    %684 = vst [vmem:[%s6 + $0x30] sm:$0xff] %v649
    %685 = vst [vmem:[%s6 + $0x38] sm:$0xff] %v652
    %686 = vst [vmem:[%s6 + $0x40] sm:$0xff] %v655
    %687 = vst [vmem:[%s6 + $0x48] sm:$0xff] %v658
    %688 = vst [vmem:[%s6 + $0x50] sm:$0xff] %v661
    %689 = vst [vmem:[%s6 + $0x58] sm:$0xff] %v664
    %690 = vst [vmem:[%s6 + $0x60] sm:$0xff] %v667
    %691 = vst [vmem:[%s6 + $0x68] sm:$0xff] %v670
    %692 = vst [vmem:[%s6 + $0x70] sm:$0xff] %v673
    %693 = vst [vmem:[%s6 + $0x78] sm:$0xff] %v676
  $region33: #{sage_forward_pallas.1} parent=0 // pred_fallthru
    _
  // Predicated region
  $region34: #{sage_forward_pallas.1} parent=0 // pred_check
    _
  $region35: #{sage_forward_pallas.1} parent=0 // pred_check_branch
    %695 = sbr.rel (0) target = $region37
  $region36: #{sage_forward_pallas.1} parent=0 // pred_region
    _
  $region37: #{sage_forward_pallas.1} parent=0 // pred_fallthru
    _
  // Predicated region
  $region38: #{sage_forward_pallas.1} parent=0 // pred_check
    _
  $region39: #{sage_forward_pallas.1} parent=0 // pred_check_branch
    %697 = sbr.rel (0) target = $region41
  $region40: #{sage_forward_pallas.1} parent=0 // pred_region
    _
  $region41: #{sage_forward_pallas.1} parent=0 // pred_fallthru
    _

</llo_original>
